<compile_context>
chip_gen: v7x
topology: tpu7x:2x2x1
jax: 0.10.0
libtpu: 0.0.40
codegen_flags: <defaults>
</compile_context>

<pallas_src>
import functools

import jax
import jax.numpy as jnp
from jax.experimental import pallas as pl
from jax.experimental.pallas import tpu as pltpu


def _conv_relu_kernel(x_ref, w_ref, o_ref, lhs_ref, *, N, Cin, Cout, H, W, K, pad):
    """Fused NCHW conv(K x K, stride=1, 'same', no bias) + ReLU for one small batch.

    x_ref  : (N, Cin, H, W)        NCHW activations (no wrapper transpose)
    w_ref  : (K*W*Cin, W*Cout)     banded weight; row = (ci*K + kh)*W + wi,
                                   col = co*W + wo (W zero-padding folded into band)
    o_ref  : (N, Cout, H, W)       NCHW output
    lhs_ref: (N*H, K*W*Cin) f32    scratch for the kh/batch-folded LHS slab
    """
    # Zero once: the entries never written below are exactly the H-halo taps
    # (kh=0 tap of output row 0 and kh=K-1 tap of row H-1, per image), so the
    # zeros ARE the conv's zero padding.  (~24 KiB, negligible at this size.)
    lhs_ref[...] = jnp.zeros_like(lhs_ref)

    # NCHW -> kh-folded rows: N*Cin*K (=24) static sub-tile stores, all offsets
    # known at trace time.  No lane transposes anywhere.
    for n in range(N):
        base = n * H
        for ci in range(Cin):
            xc = x_ref[n, ci, :, :]                       # (H, W) channel slab
            for kh in range(K):
                h0 = max(0, pad - kh)                     # first valid output row
                h1 = min(H, H + pad - kh)                 # one past last valid row
                col = (ci * K + kh) * W
                lhs_ref[base + h0:base + h1, col:col + W] = (
                    xc[h0 + kh - pad:h1 + kh - pad, :])

    # One fat MXU push: (N*H, K*W*Cin) x (K*W*Cin, W*Cout) with f32 accumulation.
    # Operands are bf16 when the banded weight was stored bf16 (default).
    acc = jnp.dot(lhs_ref[...].astype(w_ref.dtype), w_ref[...],
                  preferred_element_type=jnp.float32)     # (N*H, W*Cout)
    y = jnp.maximum(acc, 0.0)                             # ReLU epilogue in f32

    # Write straight back in NCHW (removes the separate output-transpose kernel).
    for n in range(N):
        for co in range(Cout):
            o_ref[n, co, :, :] = y[n * H:(n + 1) * H,
                                   co * W:(co + 1) * W].astype(o_ref.dtype)


def _build_banded_weight(w_oihw, W, pad):
    """(Cout, Cin, K, K) -> (K*W*Cin, W*Cout) banded matrix.

    banded[(ci*K + kh)*W + wi, co*W + wo] = w[co, ci, kh, wi - wo + pad]
    when 0 <= wi - wo + pad < K, else 0.  Band clipping at wi in {0, W-1}
    implements the W-direction zero padding (activations never need a W pad);
    the (ci, kh, wi) row ordering is what makes the NCHW -> LHS relayout a set
    of contiguous static stores.  Built once per (layer, W), outside jit.
    """
    Cout, Cin, K, _ = w_oihw.shape
    wi = jnp.arange(W)[:, None]
    wo = jnp.arange(W)[None, :]
    kw = wi - wo + pad                                    # (W, W)
    valid = (kw >= 0) & (kw < K)
    kw_c = jnp.clip(kw, 0, K - 1)
    w_t = jnp.transpose(w_oihw, (1, 2, 0, 3))             # (ci, kh, co, kw)
    b = w_t[:, :, :, kw_c]                                # (ci, kh, co, wi, wo)
    b = jnp.where(valid[None, None, None, :, :], b, 0.0)
    b = jnp.transpose(b, (0, 1, 3, 2, 4))                 # (ci, kh, wi, co, wo)
    return b.reshape(Cin * K * W, Cout * W)


def _forward(x_nchw, w_banded, *, Cin, Cout, K, pad):
    N, Cin_x, H, W = x_nchw.shape
    assert Cin_x == Cin
    assert w_banded.shape == (Cin * K * W, Cout * W)
    kernel = functools.partial(_conv_relu_kernel,
                               N=N, Cin=Cin, Cout=Cout, H=H, W=W, K=K, pad=pad)
    return pl.pallas_call(
        kernel,
        out_shape=jax.ShapeDtypeStruct((N, Cout, H, W), x_nchw.dtype),
        grid_spec=pltpu.PrefetchScalarGridSpec(
            num_scalar_prefetch=0,
            # Single grid step: everything (~100 KiB) is resident in VMEM.
            # For large N on v7x: grid=(N,) + dimension_semantics=("parallel",).
            grid=(1,),
            in_specs=[
                pl.BlockSpec((N, Cin, H, W), lambda i: (0, 0, 0, 0)),
                pl.BlockSpec((Cin * K * W, Cout * W), lambda i: (0, 0)),
            ],
            out_specs=pl.BlockSpec((N, Cout, H, W), lambda i: (0, 0, 0, 0)),
            scratch_shapes=[pltpu.VMEM((N * H, Cin * K * W), jnp.float32)],
        ),
        compiler_params=pltpu.CompilerParams(
            dimension_semantics=("arbitrary",)),
    )(x_nchw, w_banded)


class ConvBnReLU:
    """Inference ConvBnReLU(in_ch, out_ch, k=3, stride=1, pad=1): relu(conv(x)).

    The banded weight is precomputed once per (layer, spatial width) and cached as
    a concrete device array, so the jitted forward contains exactly one fused
    Pallas kernel and nothing else (no per-call weight rebuild, no transposes).
    """

    def __init__(self, w_oihw, *, stride=1, pad=1, compute_dtype=jnp.bfloat16):
        assert stride == 1, "this kernel implements the module's default stride=1"
        Cout, Cin, K, K2 = w_oihw.shape
        assert K == K2 and K == 2 * pad + 1, "'same'-size conv expected (K == 2*pad+1)"
        self._w = w_oihw
        self._Cin, self._Cout, self._K, self._pad = Cin, Cout, K, pad
        self._compute_dtype = compute_dtype
        self._banded = {}  # spatial width -> cached banded weight (device array)
        self._fwd = jax.jit(functools.partial(_forward, Cin=Cin, Cout=Cout,
                                              K=K, pad=pad))

    def _banded_weight(self, W):
        wb = self._banded.get(W)
        if wb is None:
            if (self._Cin * self._K * W) * (self._Cout * W) > (2 << 20):
                # TODO(synk): band-tile the weight along wo (block-banded matmul)
                # before scaling W / channels — the dense band grows ~quadratically
                # in W and would neither fit v7x's 64 MiB VMEM nor keep MXU FLOPs low.
                raise NotImplementedError(
                    "dense banded weight too large; band-tile along wo")
            wb = _build_banded_weight(self._w, W, self._pad).astype(self._compute_dtype)
            wb = jax.block_until_ready(wb)
            self._banded[W] = wb
        return wb

    def __call__(self, x_nchw):
        return self._fwd(x_nchw, self._banded_weight(x_nchw.shape[-1]))


if __name__ == "__main__":
    # Module config (synthetic, deterministic init).
    in_channels, out_channels, kernel_size, stride, pad = 4, 8, 3, 1, 1
    N, H, W = 2, 16, 16

    key = jax.random.PRNGKey(0)
    kx, kw = jax.random.split(key)
    x = jax.random.normal(kx, (N, in_channels, H, W), dtype=jnp.float32)
    # Kaiming-uniform-like deterministic weights (matches nn.Conv2d, bias=False).
    fan_in = in_channels * kernel_size * kernel_size
    bound = (1.0 / fan_in) ** 0.5
    w = jax.random.uniform(kw, (out_channels, in_channels, kernel_size, kernel_size),
                           minval=-bound, maxval=bound, dtype=jnp.float32)

    # Reference: XLA conv (NCHW / OIHW, same as PyTorch) + ReLU, in f32.
    y_ref = jax.lax.conv_general_dilated(
        x, w, window_strides=(stride, stride), padding=[(pad, pad), (pad, pad)],
        dimension_numbers=("NCHW", "OIHW", "NCHW"))
    y_ref = jnp.maximum(y_ref, 0.0)

    # Default layer: bf16 MXU operands, f32 accumulation + f32 ReLU epilogue.
    layer = ConvBnReLU(w, stride=stride, pad=pad, compute_dtype=jnp.bfloat16)
    y = jax.block_until_ready(layer(x))
    assert y.shape == (N, out_channels, H, W) and y.dtype == jnp.float32
    assert jnp.allclose(y, y_ref, atol=5e-2, rtol=5e-2)

    # Exact-parity path: f32 operands throughout (use when bit-close parity matters).
    layer_f32 = ConvBnReLU(w, stride=stride, pad=pad, compute_dtype=jnp.float32)
    y32 = jax.block_until_ready(layer_f32(x))
    assert jnp.allclose(y32, y_ref, atol=2e-4, rtol=2e-4)

    print("KERNEL_OK")
</pallas_src>

<mosaic_0001>
module attributes {stable_mosaic.version = 11 : i64} {
  func.func @_conv_relu_kernel(%arg0: i32, %arg1: memref<2x4x16x16xf32, #tpu.memory_space<vmem>>, %arg2: memref<192x128xbf16, #tpu.memory_space<vmem>>, %arg3: memref<2x8x16x16xf32, #tpu.memory_space<vmem>>, %arg4: memref<32x192xf32, #tpu.memory_space<vmem>>) attributes {dimension_semantics = [#tpu.dimension_semantics<arbitrary>], iteration_bounds = array<i64: 1>, scalar_prefetch = 0 : i64, scratch_operands = 1 : i64, tpu.core_type = #tpu.core_type<tc>, window_params = [{pipeline_mode = #tpu.pipeline_mode<synchronous>, transform_indices = @transform_0, window_bounds = array<i64: 2, 4, 16, 16>}, {pipeline_mode = #tpu.pipeline_mode<synchronous>, transform_indices = @transform_1, window_bounds = array<i64: 192, 128>}, {pipeline_mode = #tpu.pipeline_mode<synchronous>, transform_indices = @transform_2, window_bounds = array<i64: 2, 8, 16, 16>}]} {
    %cst = arith.constant 0.000000e+00 : f32
    %0 = vector.broadcast %cst : f32 to vector<32x192xf32>
    %c0 = arith.constant 0 : index
    %c0_0 = arith.constant 0 : index
    %1 = vector.load %arg4[%c0, %c0_0] : memref<32x192xf32, #tpu.memory_space<vmem>>, vector<32x192xf32>
    tpu.vector_store %arg4[%c0, %c0_0], %0 {strides = array<i32>} : memref<32x192xf32, #tpu.memory_space<vmem>>, vector<32x192xf32>,
    %c0_1 = arith.constant 0 : index
    %c0_2 = arith.constant 0 : index
    %c0_3 = arith.constant 0 : index
    %c0_4 = arith.constant 0 : index
    %2 = vector.load %arg1[%c0_1, %c0_2, %c0_3, %c0_4] : memref<2x4x16x16xf32, #tpu.memory_space<vmem>>, vector<1x1x16x16xf32>
    %3 = vector.shape_cast %2 : vector<1x1x16x16xf32> to vector<16x16xf32>
    %4 = vector.extract_strided_slice %3 {offsets = [0, 0], sizes = [15, 16], strides = [1, 1]} : vector<16x16xf32> to vector<15x16xf32>
    %c1 = arith.constant 1 : index
    %c0_5 = arith.constant 0 : index
    %5 = vector.load %arg4[%c1, %c0_5] : memref<32x192xf32, #tpu.memory_space<vmem>>, vector<15x16xf32>
    tpu.vector_store %arg4[%c1, %c0_5], %4 {strides = array<i32>} : memref<32x192xf32, #tpu.memory_space<vmem>>, vector<15x16xf32>,
    %c0_6 = arith.constant 0 : index
    %c16 = arith.constant 16 : index
    %6 = vector.load %arg4[%c0_6, %c16] : memref<32x192xf32, #tpu.memory_space<vmem>>, vector<16x16xf32>
    tpu.vector_store %arg4[%c0_6, %c16], %3 {strides = array<i32>} : memref<32x192xf32, #tpu.memory_space<vmem>>, vector<16x16xf32>,
    %7 = vector.extract_strided_slice %3 {offsets = [1, 0], sizes = [15, 16], strides = [1, 1]} : vector<16x16xf32> to vector<15x16xf32>
    %c0_7 = arith.constant 0 : index
    %c32 = arith.constant 32 : index
    %8 = vector.load %arg4[%c0_7, %c32] : memref<32x192xf32, #tpu.memory_space<vmem>>, vector<15x16xf32>
    tpu.vector_store %arg4[%c0_7, %c32], %7 {strides = array<i32>} : memref<32x192xf32, #tpu.memory_space<vmem>>, vector<15x16xf32>,
    %c0_8 = arith.constant 0 : index
    %c1_9 = arith.constant 1 : index
    %c0_10 = arith.constant 0 : index
    %c0_11 = arith.constant 0 : index
    %9 = vector.load %arg1[%c0_8, %c1_9, %c0_10, %c0_11] : memref<2x4x16x16xf32, #tpu.memory_space<vmem>>, vector<1x1x16x16xf32>
    %10 = vector.shape_cast %9 : vector<1x1x16x16xf32> to vector<16x16xf32>
    %11 = vector.extract_strided_slice %10 {offsets = [0, 0], sizes = [15, 16], strides = [1, 1]} : vector<16x16xf32> to vector<15x16xf32>
    %c1_12 = arith.constant 1 : index
    %c48 = arith.constant 48 : index
    %12 = vector.load %arg4[%c1_12, %c48] : memref<32x192xf32, #tpu.memory_space<vmem>>, vector<15x16xf32>
    tpu.vector_store %arg4[%c1_12, %c48], %11 {strides = array<i32>} : memref<32x192xf32, #tpu.memory_space<vmem>>, vector<15x16xf32>,
    %c0_13 = arith.constant 0 : index
    %c64 = arith.constant 64 : index
    %13 = vector.load %arg4[%c0_13, %c64] : memref<32x192xf32, #tpu.memory_space<vmem>>, vector<16x16xf32>
    tpu.vector_store %arg4[%c0_13, %c64], %10 {strides = array<i32>} : memref<32x192xf32, #tpu.memory_space<vmem>>, vector<16x16xf32>,
    %14 = vector.extract_strided_slice %10 {offsets = [1, 0], sizes = [15, 16], strides = [1, 1]} : vector<16x16xf32> to vector<15x16xf32>
    %c0_14 = arith.constant 0 : index
    %c80 = arith.constant 80 : index
    %15 = vector.load %arg4[%c0_14, %c80] : memref<32x192xf32, #tpu.memory_space<vmem>>, vector<15x16xf32>
    tpu.vector_store %arg4[%c0_14, %c80], %14 {strides = array<i32>} : memref<32x192xf32, #tpu.memory_space<vmem>>, vector<15x16xf32>,
    %c0_15 = arith.constant 0 : index
    %c2 = arith.constant 2 : index
    %c0_16 = arith.constant 0 : index
    %c0_17 = arith.constant 0 : index
    %16 = vector.load %arg1[%c0_15, %c2, %c0_16, %c0_17] : memref<2x4x16x16xf32, #tpu.memory_space<vmem>>, vector<1x1x16x16xf32>
    %17 = vector.shape_cast %16 : vector<1x1x16x16xf32> to vector<16x16xf32>
    %18 = vector.extract_strided_slice %17 {offsets = [0, 0], sizes = [15, 16], strides = [1, 1]} : vector<16x16xf32> to vector<15x16xf32>
    %c1_18 = arith.constant 1 : index
    %c96 = arith.constant 96 : index
    %19 = vector.load %arg4[%c1_18, %c96] : memref<32x192xf32, #tpu.memory_space<vmem>>, vector<15x16xf32>
    tpu.vector_store %arg4[%c1_18, %c96], %18 {strides = array<i32>} : memref<32x192xf32, #tpu.memory_space<vmem>>, vector<15x16xf32>,
    %c0_19 = arith.constant 0 : index
    %c112 = arith.constant 112 : index
    %20 = vector.load %arg4[%c0_19, %c112] : memref<32x192xf32, #tpu.memory_space<vmem>>, vector<16x16xf32>
    tpu.vector_store %arg4[%c0_19, %c112], %17 {strides = array<i32>} : memref<32x192xf32, #tpu.memory_space<vmem>>, vector<16x16xf32>,
    %21 = vector.extract_strided_slice %17 {offsets = [1, 0], sizes = [15, 16], strides = [1, 1]} : vector<16x16xf32> to vector<15x16xf32>
    %c0_20 = arith.constant 0 : index
    %c128 = arith.constant 128 : index
    %22 = vector.load %arg4[%c0_20, %c128] : memref<32x192xf32, #tpu.memory_space<vmem>>, vector<15x16xf32>
    tpu.vector_store %arg4[%c0_20, %c128], %21 {strides = array<i32>} : memref<32x192xf32, #tpu.memory_space<vmem>>, vector<15x16xf32>,
    %c0_21 = arith.constant 0 : index
    %c3 = arith.constant 3 : index
    %c0_22 = arith.constant 0 : index
    %c0_23 = arith.constant 0 : index
    %23 = vector.load %arg1[%c0_21, %c3, %c0_22, %c0_23] : memref<2x4x16x16xf32, #tpu.memory_space<vmem>>, vector<1x1x16x16xf32>
    %24 = vector.shape_cast %23 : vector<1x1x16x16xf32> to vector<16x16xf32>
    %25 = vector.extract_strided_slice %24 {offsets = [0, 0], sizes = [15, 16], strides = [1, 1]} : vector<16x16xf32> to vector<15x16xf32>
    %c1_24 = arith.constant 1 : index
    %c144 = arith.constant 144 : index
    %26 = vector.load %arg4[%c1_24, %c144] : memref<32x192xf32, #tpu.memory_space<vmem>>, vector<15x16xf32>
    tpu.vector_store %arg4[%c1_24, %c144], %25 {strides = array<i32>} : memref<32x192xf32, #tpu.memory_space<vmem>>, vector<15x16xf32>,
    %c0_25 = arith.constant 0 : index
    %c160 = arith.constant 160 : index
    %27 = vector.load %arg4[%c0_25, %c160] : memref<32x192xf32, #tpu.memory_space<vmem>>, vector<16x16xf32>
    tpu.vector_store %arg4[%c0_25, %c160], %24 {strides = array<i32>} : memref<32x192xf32, #tpu.memory_space<vmem>>, vector<16x16xf32>,
    %28 = vector.extract_strided_slice %24 {offsets = [1, 0], sizes = [15, 16], strides = [1, 1]} : vector<16x16xf32> to vector<15x16xf32>
    %c0_26 = arith.constant 0 : index
    %c176 = arith.constant 176 : index
    %29 = vector.load %arg4[%c0_26, %c176] : memref<32x192xf32, #tpu.memory_space<vmem>>, vector<15x16xf32>
    tpu.vector_store %arg4[%c0_26, %c176], %28 {strides = array<i32>} : memref<32x192xf32, #tpu.memory_space<vmem>>, vector<15x16xf32>,
    %c1_27 = arith.constant 1 : index
    %c0_28 = arith.constant 0 : index
    %c0_29 = arith.constant 0 : index
    %c0_30 = arith.constant 0 : index
    %30 = vector.load %arg1[%c1_27, %c0_28, %c0_29, %c0_30] : memref<2x4x16x16xf32, #tpu.memory_space<vmem>>, vector<1x1x16x16xf32>
    %31 = vector.shape_cast %30 : vector<1x1x16x16xf32> to vector<16x16xf32>
    %32 = vector.extract_strided_slice %31 {offsets = [0, 0], sizes = [15, 16], strides = [1, 1]} : vector<16x16xf32> to vector<15x16xf32>
    %c17 = arith.constant 17 : index
    %c0_31 = arith.constant 0 : index
    %33 = vector.load %arg4[%c17, %c0_31] : memref<32x192xf32, #tpu.memory_space<vmem>>, vector<15x16xf32>
    tpu.vector_store %arg4[%c17, %c0_31], %32 {strides = array<i32>} : memref<32x192xf32, #tpu.memory_space<vmem>>, vector<15x16xf32>,
    %c16_32 = arith.constant 16 : index
    %c16_33 = arith.constant 16 : index
    %34 = vector.load %arg4[%c16_32, %c16_33] : memref<32x192xf32, #tpu.memory_space<vmem>>, vector<16x16xf32>
    tpu.vector_store %arg4[%c16_32, %c16_33], %31 {strides = array<i32>} : memref<32x192xf32, #tpu.memory_space<vmem>>, vector<16x16xf32>,
    %35 = vector.extract_strided_slice %31 {offsets = [1, 0], sizes = [15, 16], strides = [1, 1]} : vector<16x16xf32> to vector<15x16xf32>
    %c16_34 = arith.constant 16 : index
    %c32_35 = arith.constant 32 : index
    %36 = vector.load %arg4[%c16_34, %c32_35] : memref<32x192xf32, #tpu.memory_space<vmem>>, vector<15x16xf32>
    tpu.vector_store %arg4[%c16_34, %c32_35], %35 {strides = array<i32>} : memref<32x192xf32, #tpu.memory_space<vmem>>, vector<15x16xf32>,
    %c1_36 = arith.constant 1 : index
    %c1_37 = arith.constant 1 : index
    %c0_38 = arith.constant 0 : index
    %c0_39 = arith.constant 0 : index
    %37 = vector.load %arg1[%c1_36, %c1_37, %c0_38, %c0_39] : memref<2x4x16x16xf32, #tpu.memory_space<vmem>>, vector<1x1x16x16xf32>
    %38 = vector.shape_cast %37 : vector<1x1x16x16xf32> to vector<16x16xf32>
    %39 = vector.extract_strided_slice %38 {offsets = [0, 0], sizes = [15, 16], strides = [1, 1]} : vector<16x16xf32> to vector<15x16xf32>
    %c17_40 = arith.constant 17 : index
    %c48_41 = arith.constant 48 : index
    %40 = vector.load %arg4[%c17_40, %c48_41] : memref<32x192xf32, #tpu.memory_space<vmem>>, vector<15x16xf32>
    tpu.vector_store %arg4[%c17_40, %c48_41], %39 {strides = array<i32>} : memref<32x192xf32, #tpu.memory_space<vmem>>, vector<15x16xf32>,
    %c16_42 = arith.constant 16 : index
    %c64_43 = arith.constant 64 : index
    %41 = vector.load %arg4[%c16_42, %c64_43] : memref<32x192xf32, #tpu.memory_space<vmem>>, vector<16x16xf32>
    tpu.vector_store %arg4[%c16_42, %c64_43], %38 {strides = array<i32>} : memref<32x192xf32, #tpu.memory_space<vmem>>, vector<16x16xf32>,
    %42 = vector.extract_strided_slice %38 {offsets = [1, 0], sizes = [15, 16], strides = [1, 1]} : vector<16x16xf32> to vector<15x16xf32>
    %c16_44 = arith.constant 16 : index
    %c80_45 = arith.constant 80 : index
    %43 = vector.load %arg4[%c16_44, %c80_45] : memref<32x192xf32, #tpu.memory_space<vmem>>, vector<15x16xf32>
    tpu.vector_store %arg4[%c16_44, %c80_45], %42 {strides = array<i32>} : memref<32x192xf32, #tpu.memory_space<vmem>>, vector<15x16xf32>,
    %c1_46 = arith.constant 1 : index
    %c2_47 = arith.constant 2 : index
    %c0_48 = arith.constant 0 : index
    %c0_49 = arith.constant 0 : index
    %44 = vector.load %arg1[%c1_46, %c2_47, %c0_48, %c0_49] : memref<2x4x16x16xf32, #tpu.memory_space<vmem>>, vector<1x1x16x16xf32>
    %45 = vector.shape_cast %44 : vector<1x1x16x16xf32> to vector<16x16xf32>
    %46 = vector.extract_strided_slice %45 {offsets = [0, 0], sizes = [15, 16], strides = [1, 1]} : vector<16x16xf32> to vector<15x16xf32>
    %c17_50 = arith.constant 17 : index
    %c96_51 = arith.constant 96 : index
    %47 = vector.load %arg4[%c17_50, %c96_51] : memref<32x192xf32, #tpu.memory_space<vmem>>, vector<15x16xf32>
    tpu.vector_store %arg4[%c17_50, %c96_51], %46 {strides = array<i32>} : memref<32x192xf32, #tpu.memory_space<vmem>>, vector<15x16xf32>,
    %c16_52 = arith.constant 16 : index
    %c112_53 = arith.constant 112 : index
    %48 = vector.load %arg4[%c16_52, %c112_53] : memref<32x192xf32, #tpu.memory_space<vmem>>, vector<16x16xf32>
    tpu.vector_store %arg4[%c16_52, %c112_53], %45 {strides = array<i32>} : memref<32x192xf32, #tpu.memory_space<vmem>>, vector<16x16xf32>,
    %49 = vector.extract_strided_slice %45 {offsets = [1, 0], sizes = [15, 16], strides = [1, 1]} : vector<16x16xf32> to vector<15x16xf32>
    %c16_54 = arith.constant 16 : index
    %c128_55 = arith.constant 128 : index
    %50 = vector.load %arg4[%c16_54, %c128_55] : memref<32x192xf32, #tpu.memory_space<vmem>>, vector<15x16xf32>
    tpu.vector_store %arg4[%c16_54, %c128_55], %49 {strides = array<i32>} : memref<32x192xf32, #tpu.memory_space<vmem>>, vector<15x16xf32>,
    %c1_56 = arith.constant 1 : index
    %c3_57 = arith.constant 3 : index
    %c0_58 = arith.constant 0 : index
    %c0_59 = arith.constant 0 : index
    %51 = vector.load %arg1[%c1_56, %c3_57, %c0_58, %c0_59] : memref<2x4x16x16xf32, #tpu.memory_space<vmem>>, vector<1x1x16x16xf32>
    %52 = vector.shape_cast %51 : vector<1x1x16x16xf32> to vector<16x16xf32>
    %53 = vector.extract_strided_slice %52 {offsets = [0, 0], sizes = [15, 16], strides = [1, 1]} : vector<16x16xf32> to vector<15x16xf32>
    %c17_60 = arith.constant 17 : index
    %c144_61 = arith.constant 144 : index
    %54 = vector.load %arg4[%c17_60, %c144_61] : memref<32x192xf32, #tpu.memory_space<vmem>>, vector<15x16xf32>
    tpu.vector_store %arg4[%c17_60, %c144_61], %53 {strides = array<i32>} : memref<32x192xf32, #tpu.memory_space<vmem>>, vector<15x16xf32>,
    %c16_62 = arith.constant 16 : index
    %c160_63 = arith.constant 160 : index
    %55 = vector.load %arg4[%c16_62, %c160_63] : memref<32x192xf32, #tpu.memory_space<vmem>>, vector<16x16xf32>
    tpu.vector_store %arg4[%c16_62, %c160_63], %52 {strides = array<i32>} : memref<32x192xf32, #tpu.memory_space<vmem>>, vector<16x16xf32>,
    %56 = vector.extract_strided_slice %52 {offsets = [1, 0], sizes = [15, 16], strides = [1, 1]} : vector<16x16xf32> to vector<15x16xf32>
    %c16_64 = arith.constant 16 : index
    %c176_65 = arith.constant 176 : index
    %57 = vector.load %arg4[%c16_64, %c176_65] : memref<32x192xf32, #tpu.memory_space<vmem>>, vector<15x16xf32>
    tpu.vector_store %arg4[%c16_64, %c176_65], %56 {strides = array<i32>} : memref<32x192xf32, #tpu.memory_space<vmem>>, vector<15x16xf32>,
    %c0_66 = arith.constant 0 : index
    %c0_67 = arith.constant 0 : index
    %58 = vector.load %arg4[%c0_66, %c0_67] : memref<32x192xf32, #tpu.memory_space<vmem>>, vector<32x192xf32>
    %59 = arith.truncf %58 : vector<32x192xf32> to vector<32x192xbf16>
    %c0_68 = arith.constant 0 : index
    %c0_69 = arith.constant 0 : index
    %60 = vector.load %arg2[%c0_68, %c0_69] : memref<192x128xbf16, #tpu.memory_space<vmem>>, vector<192x128xbf16>
    %cst_70 = arith.constant dense<0.000000e+00> : vector<32x128xf32>
    %61 = tpu.matmul %59, %60, %cst_70 {dimension_numbers = #tpu.dot_dimension_numbers<[1], [0], [0], [1], [0, 0, 1, 1], [], []>} : vector<32x192xbf16>, vector<192x128xbf16>, vector<32x128xf32> -> vector<32x128xf32>
    %cst_71 = arith.constant 0.000000e+00 : f32
    %62 = vector.broadcast %cst_71 : f32 to vector<32x128xf32>
    %63 = arith.maximumf %61, %62 : vector<32x128xf32>
    %64 = vector.extract_strided_slice %63 {offsets = [0, 0], sizes = [16, 16], strides = [1, 1]} : vector<32x128xf32> to vector<16x16xf32>
    %c0_72 = arith.constant 0 : index
    %c0_73 = arith.constant 0 : index
    %c0_74 = arith.constant 0 : index
    %c0_75 = arith.constant 0 : index
    %65 = vector.load %arg3[%c0_72, %c0_73, %c0_74, %c0_75] : memref<2x8x16x16xf32, #tpu.memory_space<vmem>>, vector<1x1x16x16xf32>
    %66 = vector.shape_cast %65 : vector<1x1x16x16xf32> to vector<16x16xf32>
    %67 = vector.shape_cast %64 : vector<16x16xf32> to vector<1x1x16x16xf32>
    tpu.vector_store %arg3[%c0_72, %c0_73, %c0_74, %c0_75], %67 {strides = array<i32>} : memref<2x8x16x16xf32, #tpu.memory_space<vmem>>, vector<1x1x16x16xf32>,
    %68 = vector.extract_strided_slice %63 {offsets = [0, 16], sizes = [16, 16], strides = [1, 1]} : vector<32x128xf32> to vector<16x16xf32>
    %c0_76 = arith.constant 0 : index
    %c1_77 = arith.constant 1 : index
    %c0_78 = arith.constant 0 : index
    %c0_79 = arith.constant 0 : index
    %69 = vector.load %arg3[%c0_76, %c1_77, %c0_78, %c0_79] : memref<2x8x16x16xf32, #tpu.memory_space<vmem>>, vector<1x1x16x16xf32>
    %70 = vector.shape_cast %69 : vector<1x1x16x16xf32> to vector<16x16xf32>
    %71 = vector.shape_cast %68 : vector<16x16xf32> to vector<1x1x16x16xf32>
    tpu.vector_store %arg3[%c0_76, %c1_77, %c0_78, %c0_79], %71 {strides = array<i32>} : memref<2x8x16x16xf32, #tpu.memory_space<vmem>>, vector<1x1x16x16xf32>,
    %72 = vector.extract_strided_slice %63 {offsets = [0, 32], sizes = [16, 16], strides = [1, 1]} : vector<32x128xf32> to vector<16x16xf32>
    %c0_80 = arith.constant 0 : index
    %c2_81 = arith.constant 2 : index
    %c0_82 = arith.constant 0 : index
    %c0_83 = arith.constant 0 : index
    %73 = vector.load %arg3[%c0_80, %c2_81, %c0_82, %c0_83] : memref<2x8x16x16xf32, #tpu.memory_space<vmem>>, vector<1x1x16x16xf32>
    %74 = vector.shape_cast %73 : vector<1x1x16x16xf32> to vector<16x16xf32>
    %75 = vector.shape_cast %72 : vector<16x16xf32> to vector<1x1x16x16xf32>
    tpu.vector_store %arg3[%c0_80, %c2_81, %c0_82, %c0_83], %75 {strides = array<i32>} : memref<2x8x16x16xf32, #tpu.memory_space<vmem>>, vector<1x1x16x16xf32>,
    %76 = vector.extract_strided_slice %63 {offsets = [0, 48], sizes = [16, 16], strides = [1, 1]} : vector<32x128xf32> to vector<16x16xf32>
    %c0_84 = arith.constant 0 : index
    %c3_85 = arith.constant 3 : index
    %c0_86 = arith.constant 0 : index
    %c0_87 = arith.constant 0 : index
    %77 = vector.load %arg3[%c0_84, %c3_85, %c0_86, %c0_87] : memref<2x8x16x16xf32, #tpu.memory_space<vmem>>, vector<1x1x16x16xf32>
    %78 = vector.shape_cast %77 : vector<1x1x16x16xf32> to vector<16x16xf32>
    %79 = vector.shape_cast %76 : vector<16x16xf32> to vector<1x1x16x16xf32>
    tpu.vector_store %arg3[%c0_84, %c3_85, %c0_86, %c0_87], %79 {strides = array<i32>} : memref<2x8x16x16xf32, #tpu.memory_space<vmem>>, vector<1x1x16x16xf32>,
    %80 = vector.extract_strided_slice %63 {offsets = [0, 64], sizes = [16, 16], strides = [1, 1]} : vector<32x128xf32> to vector<16x16xf32>
    %c0_88 = arith.constant 0 : index
    %c4 = arith.constant 4 : index
    %c0_89 = arith.constant 0 : index
    %c0_90 = arith.constant 0 : index
    %81 = vector.load %arg3[%c0_88, %c4, %c0_89, %c0_90] : memref<2x8x16x16xf32, #tpu.memory_space<vmem>>, vector<1x1x16x16xf32>
    %82 = vector.shape_cast %81 : vector<1x1x16x16xf32> to vector<16x16xf32>
    %83 = vector.shape_cast %80 : vector<16x16xf32> to vector<1x1x16x16xf32>
    tpu.vector_store %arg3[%c0_88, %c4, %c0_89, %c0_90], %83 {strides = array<i32>} : memref<2x8x16x16xf32, #tpu.memory_space<vmem>>, vector<1x1x16x16xf32>,
    %84 = vector.extract_strided_slice %63 {offsets = [0, 80], sizes = [16, 16], strides = [1, 1]} : vector<32x128xf32> to vector<16x16xf32>
    %c0_91 = arith.constant 0 : index
    %c5 = arith.constant 5 : index
    %c0_92 = arith.constant 0 : index
    %c0_93 = arith.constant 0 : index
    %85 = vector.load %arg3[%c0_91, %c5, %c0_92, %c0_93] : memref<2x8x16x16xf32, #tpu.memory_space<vmem>>, vector<1x1x16x16xf32>
    %86 = vector.shape_cast %85 : vector<1x1x16x16xf32> to vector<16x16xf32>
    %87 = vector.shape_cast %84 : vector<16x16xf32> to vector<1x1x16x16xf32>
    tpu.vector_store %arg3[%c0_91, %c5, %c0_92, %c0_93], %87 {strides = array<i32>} : memref<2x8x16x16xf32, #tpu.memory_space<vmem>>, vector<1x1x16x16xf32>,
    %88 = vector.extract_strided_slice %63 {offsets = [0, 96], sizes = [16, 16], strides = [1, 1]} : vector<32x128xf32> to vector<16x16xf32>
    %c0_94 = arith.constant 0 : index
    %c6 = arith.constant 6 : index
    %c0_95 = arith.constant 0 : index
    %c0_96 = arith.constant 0 : index
    %89 = vector.load %arg3[%c0_94, %c6, %c0_95, %c0_96] : memref<2x8x16x16xf32, #tpu.memory_space<vmem>>, vector<1x1x16x16xf32>
    %90 = vector.shape_cast %89 : vector<1x1x16x16xf32> to vector<16x16xf32>
    %91 = vector.shape_cast %88 : vector<16x16xf32> to vector<1x1x16x16xf32>
    tpu.vector_store %arg3[%c0_94, %c6, %c0_95, %c0_96], %91 {strides = array<i32>} : memref<2x8x16x16xf32, #tpu.memory_space<vmem>>, vector<1x1x16x16xf32>,
    %92 = vector.extract_strided_slice %63 {offsets = [0, 112], sizes = [16, 16], strides = [1, 1]} : vector<32x128xf32> to vector<16x16xf32>
    %c0_97 = arith.constant 0 : index
    %c7 = arith.constant 7 : index
    %c0_98 = arith.constant 0 : index
    %c0_99 = arith.constant 0 : index
    %93 = vector.load %arg3[%c0_97, %c7, %c0_98, %c0_99] : memref<2x8x16x16xf32, #tpu.memory_space<vmem>>, vector<1x1x16x16xf32>
    %94 = vector.shape_cast %93 : vector<1x1x16x16xf32> to vector<16x16xf32>
    %95 = vector.shape_cast %92 : vector<16x16xf32> to vector<1x1x16x16xf32>
    tpu.vector_store %arg3[%c0_97, %c7, %c0_98, %c0_99], %95 {strides = array<i32>} : memref<2x8x16x16xf32, #tpu.memory_space<vmem>>, vector<1x1x16x16xf32>,
    %96 = vector.extract_strided_slice %63 {offsets = [16, 0], sizes = [16, 16], strides = [1, 1]} : vector<32x128xf32> to vector<16x16xf32>
    %c1_100 = arith.constant 1 : index
    %c0_101 = arith.constant 0 : index
    %c0_102 = arith.constant 0 : index
    %c0_103 = arith.constant 0 : index
    %97 = vector.load %arg3[%c1_100, %c0_101, %c0_102, %c0_103] : memref<2x8x16x16xf32, #tpu.memory_space<vmem>>, vector<1x1x16x16xf32>
    %98 = vector.shape_cast %97 : vector<1x1x16x16xf32> to vector<16x16xf32>
    %99 = vector.shape_cast %96 : vector<16x16xf32> to vector<1x1x16x16xf32>
    tpu.vector_store %arg3[%c1_100, %c0_101, %c0_102, %c0_103], %99 {strides = array<i32>} : memref<2x8x16x16xf32, #tpu.memory_space<vmem>>, vector<1x1x16x16xf32>,
    %100 = vector.extract_strided_slice %63 {offsets = [16, 16], sizes = [16, 16], strides = [1, 1]} : vector<32x128xf32> to vector<16x16xf32>
    %c1_104 = arith.constant 1 : index
    %c1_105 = arith.constant 1 : index
    %c0_106 = arith.constant 0 : index
    %c0_107 = arith.constant 0 : index
    %101 = vector.load %arg3[%c1_104, %c1_105, %c0_106, %c0_107] : memref<2x8x16x16xf32, #tpu.memory_space<vmem>>, vector<1x1x16x16xf32>
    %102 = vector.shape_cast %101 : vector<1x1x16x16xf32> to vector<16x16xf32>
    %103 = vector.shape_cast %100 : vector<16x16xf32> to vector<1x1x16x16xf32>
    tpu.vector_store %arg3[%c1_104, %c1_105, %c0_106, %c0_107], %103 {strides = array<i32>} : memref<2x8x16x16xf32, #tpu.memory_space<vmem>>, vector<1x1x16x16xf32>,
    %104 = vector.extract_strided_slice %63 {offsets = [16, 32], sizes = [16, 16], strides = [1, 1]} : vector<32x128xf32> to vector<16x16xf32>
    %c1_108 = arith.constant 1 : index
    %c2_109 = arith.constant 2 : index
    %c0_110 = arith.constant 0 : index
    %c0_111 = arith.constant 0 : index
    %105 = vector.load %arg3[%c1_108, %c2_109, %c0_110, %c0_111] : memref<2x8x16x16xf32, #tpu.memory_space<vmem>>, vector<1x1x16x16xf32>
    %106 = vector.shape_cast %105 : vector<1x1x16x16xf32> to vector<16x16xf32>
    %107 = vector.shape_cast %104 : vector<16x16xf32> to vector<1x1x16x16xf32>
    tpu.vector_store %arg3[%c1_108, %c2_109, %c0_110, %c0_111], %107 {strides = array<i32>} : memref<2x8x16x16xf32, #tpu.memory_space<vmem>>, vector<1x1x16x16xf32>,
    %108 = vector.extract_strided_slice %63 {offsets = [16, 48], sizes = [16, 16], strides = [1, 1]} : vector<32x128xf32> to vector<16x16xf32>
    %c1_112 = arith.constant 1 : index
    %c3_113 = arith.constant 3 : index
    %c0_114 = arith.constant 0 : index
    %c0_115 = arith.constant 0 : index
    %109 = vector.load %arg3[%c1_112, %c3_113, %c0_114, %c0_115] : memref<2x8x16x16xf32, #tpu.memory_space<vmem>>, vector<1x1x16x16xf32>
    %110 = vector.shape_cast %109 : vector<1x1x16x16xf32> to vector<16x16xf32>
    %111 = vector.shape_cast %108 : vector<16x16xf32> to vector<1x1x16x16xf32>
    tpu.vector_store %arg3[%c1_112, %c3_113, %c0_114, %c0_115], %111 {strides = array<i32>} : memref<2x8x16x16xf32, #tpu.memory_space<vmem>>, vector<1x1x16x16xf32>,
    %112 = vector.extract_strided_slice %63 {offsets = [16, 64], sizes = [16, 16], strides = [1, 1]} : vector<32x128xf32> to vector<16x16xf32>
    %c1_116 = arith.constant 1 : index
    %c4_117 = arith.constant 4 : index
    %c0_118 = arith.constant 0 : index
    %c0_119 = arith.constant 0 : index
    %113 = vector.load %arg3[%c1_116, %c4_117, %c0_118, %c0_119] : memref<2x8x16x16xf32, #tpu.memory_space<vmem>>, vector<1x1x16x16xf32>
    %114 = vector.shape_cast %113 : vector<1x1x16x16xf32> to vector<16x16xf32>
    %115 = vector.shape_cast %112 : vector<16x16xf32> to vector<1x1x16x16xf32>
    tpu.vector_store %arg3[%c1_116, %c4_117, %c0_118, %c0_119], %115 {strides = array<i32>} : memref<2x8x16x16xf32, #tpu.memory_space<vmem>>, vector<1x1x16x16xf32>,
    %116 = vector.extract_strided_slice %63 {offsets = [16, 80], sizes = [16, 16], strides = [1, 1]} : vector<32x128xf32> to vector<16x16xf32>
    %c1_120 = arith.constant 1 : index
    %c5_121 = arith.constant 5 : index
    %c0_122 = arith.constant 0 : index
    %c0_123 = arith.constant 0 : index
    %117 = vector.load %arg3[%c1_120, %c5_121, %c0_122, %c0_123] : memref<2x8x16x16xf32, #tpu.memory_space<vmem>>, vector<1x1x16x16xf32>
    %118 = vector.shape_cast %117 : vector<1x1x16x16xf32> to vector<16x16xf32>
    %119 = vector.shape_cast %116 : vector<16x16xf32> to vector<1x1x16x16xf32>
    tpu.vector_store %arg3[%c1_120, %c5_121, %c0_122, %c0_123], %119 {strides = array<i32>} : memref<2x8x16x16xf32, #tpu.memory_space<vmem>>, vector<1x1x16x16xf32>,
    %120 = vector.extract_strided_slice %63 {offsets = [16, 96], sizes = [16, 16], strides = [1, 1]} : vector<32x128xf32> to vector<16x16xf32>
    %c1_124 = arith.constant 1 : index
    %c6_125 = arith.constant 6 : index
    %c0_126 = arith.constant 0 : index
    %c0_127 = arith.constant 0 : index
    %121 = vector.load %arg3[%c1_124, %c6_125, %c0_126, %c0_127] : memref<2x8x16x16xf32, #tpu.memory_space<vmem>>, vector<1x1x16x16xf32>
    %122 = vector.shape_cast %121 : vector<1x1x16x16xf32> to vector<16x16xf32>
    %123 = vector.shape_cast %120 : vector<16x16xf32> to vector<1x1x16x16xf32>
    tpu.vector_store %arg3[%c1_124, %c6_125, %c0_126, %c0_127], %123 {strides = array<i32>} : memref<2x8x16x16xf32, #tpu.memory_space<vmem>>, vector<1x1x16x16xf32>,
    %124 = vector.extract_strided_slice %63 {offsets = [16, 112], sizes = [16, 16], strides = [1, 1]} : vector<32x128xf32> to vector<16x16xf32>
    %c1_128 = arith.constant 1 : index
    %c7_129 = arith.constant 7 : index
    %c0_130 = arith.constant 0 : index
    %c0_131 = arith.constant 0 : index
    %125 = vector.load %arg3[%c1_128, %c7_129, %c0_130, %c0_131] : memref<2x8x16x16xf32, #tpu.memory_space<vmem>>, vector<1x1x16x16xf32>
    %126 = vector.shape_cast %125 : vector<1x1x16x16xf32> to vector<16x16xf32>
    %127 = vector.shape_cast %124 : vector<16x16xf32> to vector<1x1x16x16xf32>
    tpu.vector_store %arg3[%c1_128, %c7_129, %c0_130, %c0_131], %127 {strides = array<i32>} : memref<2x8x16x16xf32, #tpu.memory_space<vmem>>, vector<1x1x16x16xf32>,
    return
  }
  func.func @transform_0(%arg0: i32) -> (i32, i32, i32, i32) {
    %c0_i32 = arith.constant 0 : i32
    %c0_i32_0 = arith.constant 0 : i32
    %c0_i32_1 = arith.constant 0 : i32
    %c0_i32_2 = arith.constant 0 : i32
    %c0_i32_3 = arith.constant 0 : i32
    return %c0_i32, %c0_i32_0, %c0_i32_1, %c0_i32_2 : i32, i32, i32, i32
  }
  func.func @transform_1(%arg0: i32) -> (i32, i32) {
    %c0_i32 = arith.constant 0 : i32
    %c0_i32_0 = arith.constant 0 : i32
    %c0_i32_1 = arith.constant 0 : i32
    return %c0_i32, %c0_i32_0 : i32, i32
  }
  func.func @transform_2(%arg0: i32) -> (i32, i32, i32, i32) {
    %c0_i32 = arith.constant 0 : i32
    %c0_i32_0 = arith.constant 0 : i32
    %c0_i32_1 = arith.constant 0 : i32
    %c0_i32_2 = arith.constant 0 : i32
    %c0_i32_3 = arith.constant 0 : i32
    return %c0_i32, %c0_i32_0, %c0_i32_1, %c0_i32_2 : i32, i32, i32, i32
  }
}

</mosaic_0001>

<llo_original>
// kernel: _forward.1
$region0: #{_forward.1}
  #allocation0 [shape = 'u32[]', space=smem, size = 0x4, offset = 0x4, fixed_abs, tag = 'smem constant byte address 0x4 - core index']
  #allocation1 [shape = 'u32[144,128]{1,0:T(1,128)}', space=vmem, size = 0x12000, scoped, tag = 'internal scratch']
  #allocation2 [shape = 'f32[32,192]{1,0:T(8,128)}', space=vmem, size = 0x8000, scoped, tag = 'scratch operand']
  %s0 = inlined_call_operand.hbm [shape: f32[2,4,16,16], index: 0, kind: input, shape index: {}]
  %s1 = inlined_call_operand.hbm [shape: bf16[192,128], index: 1, kind: input, shape index: {}]
  %s2 = inlined_call_operand.hbm [shape: f32[2,8,16,16], index: 2, kind: output, shape index: {}]
  %s3 = sld [smem:[#allocation0]]
  $region26: #{_forward.1} parent=0
    _
  %s5 = ssub.s32 1, %s3
  %s6 = scalar_select 0, %s5, %s3
  $region1: #{_forward.1} parent=0
    #allocation3 [shape = 'u8[65536]{0}', space=vmem, size = 0x10000, scoped, tag = 'input window, operand 0, single buffered']
    #allocation4 [shape = 's32[1]{0}', space=sflag, size = 0x4, scoped, tag = 'scoped memory for _forward.1']
    #allocation5 [shape = 's32[1]{0}', space=sflag, size = 0x4, scoped, tag = 'scoped memory for _forward.1']
    #allocation6 [shape = 'u8[49152]{0}', space=vmem, size = 0xc000, scoped, tag = 'input window, operand 1, single buffered']
    #allocation7 [shape = 's32[1]{0}', space=sflag, size = 0x4, scoped, tag = 'scoped memory for _forward.1']
    #allocation8 [shape = 'u8[131072]{0}', space=vmem, size = 0x20000, scoped, tag = 'output window, operand 0, single buffered']
    %7 = vsyncpa [#allocation4], 0
    %8 = vsyncpa [#allocation7], 0
    %9 = vsyncpa [#allocation5], 0
    // Predicated region
    $region2: #{_forward.1} parent=1 // pred_check
      _
    $region3: #{_forward.1} parent=1 // pred_check_branch
      %11 = sbr.rel (0) target = $region5
    $region4: #{_forward.1} parent=1 // pred_region
      %s13 = ssub.s32 2048, 2048
      %14 = vsyncadd [#allocation4], %s13
      %s15 = sshll.u32 [#allocation3], 4
      %s16 = int_to_ptr.vmem [resolvable:$true] %s15
      %21 = dma.hbm_to_vmem [thread:$0]  %s0, 2048, %s16, [#allocation4], 128, 128, 8
    $region5: #{_forward.1} parent=1 // pred_fallthru
      _
    // Predicated region
    $region6: #{_forward.1} parent=1 // pred_check
      _
    $region7: #{_forward.1} parent=1 // pred_check_branch
      %23 = sbr.rel (0) target = $region9
    $region8: #{_forward.1} parent=1 // pred_region
      %s25 = ssub.s32 1536, 1536
      %26 = vsyncadd [#allocation7], %s25
      %s27 = sshll.u32 [#allocation6], 4
      %s28 = int_to_ptr.vmem [resolvable:$true] %s27
      %33 = dma.hbm_to_vmem [thread:$0]  %s1, 1536, %s28, [#allocation7], 64, 64, 4
    $region9: #{_forward.1} parent=1 // pred_fallthru
      _
    // Predicated region
    $region10: #{_forward.1} parent=1 // pred_check
      _
    $region11: #{_forward.1} parent=1 // pred_check_branch
      %35 = sbr.rel (0) target = $region13
    $region12: #{_forward.1} parent=1 // pred_region
      %36 = dma.done [#allocation4], 2048
    $region13: #{_forward.1} parent=1 // pred_fallthru
      _
    // Predicated region
    $region14: #{_forward.1} parent=1 // pred_check
      _
    $region15: #{_forward.1} parent=1 // pred_check_branch
      %38 = sbr.rel (0) target = $region17
    $region16: #{_forward.1} parent=1 // pred_region
      %39 = dma.done [#allocation7], 1536
    $region17: #{_forward.1} parent=1 // pred_fallthru
      _
    %41 = vst [vmem:[#allocation2] sm:$0xff] 0.0
    %vm42 = vcmask 523264
    %43 = vst.msk [vmem:[#allocation2 + $0x8] sm:$0xff] %vm42, 0.0
    %44 = vst [vmem:[#allocation2 + $0x10] sm:$0xff] 0.0
    %45 = vst.msk [vmem:[#allocation2 + $0x18] sm:$0xff] %vm42, 0.0
    %46 = vst [vmem:[#allocation2 + $0x20] sm:$0xff] 0.0
    %47 = vst.msk [vmem:[#allocation2 + $0x28] sm:$0xff] %vm42, 0.0
    %48 = vst [vmem:[#allocation2 + $0x30] sm:$0xff] 0.0
    %49 = vst.msk [vmem:[#allocation2 + $0x38] sm:$0xff] %vm42, 0.0
    %v50 = vld [vmem:[#allocation3] sm:$0xff]
    %v51 = vld [vmem:[#allocation3 + $0x8] sm:$0xff]
    %vm54 = vcmask 1040384
    %v55 = vrot.slane %v50, 7
    %v56 = vrot.slane %v51, 7
    %v57 = vsel %vm54, %v55, %v56
    %vm60 = vcmask 130049
    %61 = vst.msk [vmem:[#allocation2] sm:$0xfe] %vm60, %v55
    %vm62 = vcmask 130048
    %63 = vst.msk [vmem:[#allocation2 + $0x10] sm:$0xff] %vm62, %v57
    %64 = vrot.lane.b32.xlu0 %v50, 16
    %v65 = vpop.permute.xlu0 %64
    %66 = vrot.lane.b32.xlu0 %v51, 16
    %v67 = vpop.permute.xlu0 %66
    %vm70 = vcmask 261248
    %71 = vst.msk [vmem:[#allocation2] sm:$0xff] %vm70, %v65
    %72 = vst.msk [vmem:[#allocation2 + $0x10] sm:$0xff] %vm70, %v67
    %vm73 = vcmask 1046528
    %v74 = vrot.slane %v50, 1
    %v75 = vrot.slane %v51, 1
    %v76 = vsel %vm73, %v74, %v75
    %77 = vrot.lane.b32.xlu0 %v76, 32
    %v78 = vpop.permute.xlu0 %77
    %79 = vrot.lane.b32.xlu0 %v75, 32
    %v80 = vpop.permute.xlu0 %79
    %vm83 = vcmask 392448
    %84 = vst.msk [vmem:[#allocation2] sm:$0xff] %vm83, %v78
    %vm85 = vcmask 391424
    %86 = vst.msk [vmem:[#allocation2 + $0x10] sm:$0x7f] %vm85, %v80
    %s87 = scalar_lea.vmem [#allocation3], 16
    %v88 = vld [vmem:[%s87] sm:$0xff]
    %v89 = vld [vmem:[%s87 + $0x8] sm:$0xff]
    %v92 = vrot.slane %v88, 7
    %v93 = vrot.slane %v89, 7
    %v94 = vsel %vm54, %v92, %v93
    %95 = vrot.lane.b32.xlu0 %v92, 48
    %v96 = vpop.permute.xlu0 %95
    %97 = vrot.lane.b32.xlu0 %v94, 48
    %v98 = vpop.permute.xlu0 %97
    %vm101 = vcmask 523649
    %102 = vst.msk [vmem:[#allocation2] sm:$0xfe] %vm101, %v96
    %vm103 = vcmask 523648
    %104 = vst.msk [vmem:[#allocation2 + $0x10] sm:$0xff] %vm103, %v98
    %105 = vrot.lane.b32.xlu0 %v88, 64
    %v106 = vpop.permute.xlu0 %105
    %107 = vrot.lane.b32.xlu0 %v89, 64
    %v108 = vpop.permute.xlu0 %107
    %vm111 = vcmask 654848
    %112 = vst.msk [vmem:[#allocation2] sm:$0xff] %vm111, %v106
    %113 = vst.msk [vmem:[#allocation2 + $0x10] sm:$0xff] %vm111, %v108
    %v114 = vrot.slane %v88, 1
    %v115 = vrot.slane %v89, 1
    %v116 = vsel %vm73, %v114, %v115
    %117 = vrot.lane.b32.xlu0 %v116, 80
    %v118 = vpop.permute.xlu0 %117
    %119 = vrot.lane.b32.xlu0 %v115, 80
    %v120 = vpop.permute.xlu0 %119
    %vm123 = vcmask 786048
    %124 = vst.msk [vmem:[#allocation2] sm:$0xff] %vm123, %v118
    %vm125 = vcmask 785024
    %126 = vst.msk [vmem:[#allocation2 + $0x10] sm:$0x7f] %vm125, %v120
    %s127 = scalar_lea.vmem [#allocation3], 32
    %v128 = vld [vmem:[%s127] sm:$0xff]
    %v129 = vld [vmem:[%s127 + $0x8] sm:$0xff]
    %v132 = vrot.slane %v128, 7
    %v133 = vrot.slane %v129, 7
    %v134 = vsel %vm54, %v132, %v133
    %135 = vrot.lane.b32.xlu0 %v132, 96
    %v136 = vpop.permute.xlu0 %135
    %137 = vrot.lane.b32.xlu0 %v134, 96
    %v138 = vpop.permute.xlu0 %137
    %vm141 = vcmask 917249
    %142 = vst.msk [vmem:[#allocation2] sm:$0xfe] %vm141, %v136
    %vm143 = vcmask 917248
    %144 = vst.msk [vmem:[#allocation2 + $0x10] sm:$0xff] %vm143, %v138
    %145 = vrot.lane.b32.xlu0 %v128, 112
    %v146 = vpop.permute.xlu0 %145
    %147 = vrot.lane.b32.xlu0 %v129, 112
    %v148 = vpop.permute.xlu0 %147
    %vm151 = vcmask 1048448
    %152 = vst.msk [vmem:[#allocation2] sm:$0xff] %vm151, %v146
    %153 = vst.msk [vmem:[#allocation2 + $0x10] sm:$0xff] %vm151, %v148
    %v154 = vrot.slane %v128, 1
    %v155 = vrot.slane %v129, 1
    %v156 = vsel %vm73, %v154, %v155
    %159 = vst.msk [vmem:[#allocation2 + $0x8] sm:$0xff] %vm62, %v156
    %vm160 = vcmask 129024
    %161 = vst.msk [vmem:[#allocation2 + $0x18] sm:$0x7f] %vm160, %v155
    %s162 = scalar_lea.vmem [#allocation3], 48
    %v163 = vld [vmem:[%s162] sm:$0xff]
    %v164 = vld [vmem:[%s162 + $0x8] sm:$0xff]
    %v167 = vrot.slane %v163, 7
    %v168 = vrot.slane %v164, 7
    %v169 = vsel %vm54, %v167, %v168
    %170 = vrot.lane.b32.xlu0 %v167, 16
    %v171 = vpop.permute.xlu0 %170
    %172 = vrot.lane.b32.xlu0 %v169, 16
    %v173 = vpop.permute.xlu0 %172
    %vm176 = vcmask 261249
    %177 = vst.msk [vmem:[#allocation2 + $0x8] sm:$0xfe] %vm176, %v171
    %178 = vst.msk [vmem:[#allocation2 + $0x18] sm:$0xff] %vm70, %v173
    %179 = vrot.lane.b32.xlu0 %v163, 32
    %v180 = vpop.permute.xlu0 %179
    %181 = vrot.lane.b32.xlu0 %v164, 32
    %v182 = vpop.permute.xlu0 %181
    %185 = vst.msk [vmem:[#allocation2 + $0x8] sm:$0xff] %vm83, %v180
    %186 = vst.msk [vmem:[#allocation2 + $0x18] sm:$0xff] %vm83, %v182
    %v187 = vrot.slane %v163, 1
    %v188 = vrot.slane %v164, 1
    %v189 = vsel %vm73, %v187, %v188
    %190 = vrot.lane.b32.xlu0 %v189, 48
    %v191 = vpop.permute.xlu0 %190
    %192 = vrot.lane.b32.xlu0 %v188, 48
    %v193 = vpop.permute.xlu0 %192
    %196 = vst.msk [vmem:[#allocation2 + $0x8] sm:$0xff] %vm103, %v191
    %vm197 = vcmask 522624
    %198 = vst.msk [vmem:[#allocation2 + $0x18] sm:$0x7f] %vm197, %v193
    %s199 = scalar_lea.vmem [#allocation3], 64
    %v200 = vld [vmem:[%s199] sm:$0xff]
    %v201 = vld [vmem:[%s199 + $0x8] sm:$0xff]
    %v204 = vrot.slane %v200, 7
    %v205 = vrot.slane %v201, 7
    %v206 = vsel %vm54, %v204, %v205
    %209 = vst.msk [vmem:[#allocation2 + $0x20] sm:$0xfe] %vm60, %v204
    %210 = vst.msk [vmem:[#allocation2 + $0x30] sm:$0xff] %vm62, %v206
    %211 = vrot.lane.b32.xlu0 %v200, 16
    %v212 = vpop.permute.xlu0 %211
    %213 = vrot.lane.b32.xlu0 %v201, 16
    %v214 = vpop.permute.xlu0 %213
    %217 = vst.msk [vmem:[#allocation2 + $0x20] sm:$0xff] %vm70, %v212
    %218 = vst.msk [vmem:[#allocation2 + $0x30] sm:$0xff] %vm70, %v214
    %v219 = vrot.slane %v200, 1
    %v220 = vrot.slane %v201, 1
    %v221 = vsel %vm73, %v219, %v220
    %222 = vrot.lane.b32.xlu0 %v221, 32
    %v223 = vpop.permute.xlu0 %222
    %224 = vrot.lane.b32.xlu0 %v220, 32
    %v225 = vpop.permute.xlu0 %224
    %228 = vst.msk [vmem:[#allocation2 + $0x20] sm:$0xff] %vm83, %v223
    %229 = vst.msk [vmem:[#allocation2 + $0x30] sm:$0x7f] %vm85, %v225
    %s230 = scalar_lea.vmem [#allocation3], 80
    %v231 = vld [vmem:[%s230] sm:$0xff]
    %v232 = vld [vmem:[%s230 + $0x8] sm:$0xff]
    %v235 = vrot.slane %v231, 7
    %v236 = vrot.slane %v232, 7
    %v237 = vsel %vm54, %v235, %v236
    %238 = vrot.lane.b32.xlu0 %v235, 48
    %v239 = vpop.permute.xlu0 %238
    %240 = vrot.lane.b32.xlu0 %v237, 48
    %v241 = vpop.permute.xlu0 %240
    %244 = vst.msk [vmem:[#allocation2 + $0x20] sm:$0xfe] %vm101, %v239
    %245 = vst.msk [vmem:[#allocation2 + $0x30] sm:$0xff] %vm103, %v241
    %246 = vrot.lane.b32.xlu0 %v231, 64
    %v247 = vpop.permute.xlu0 %246
    %248 = vrot.lane.b32.xlu0 %v232, 64
    %v249 = vpop.permute.xlu0 %248
    %252 = vst.msk [vmem:[#allocation2 + $0x20] sm:$0xff] %vm111, %v247
    %253 = vst.msk [vmem:[#allocation2 + $0x30] sm:$0xff] %vm111, %v249
    %v254 = vrot.slane %v231, 1
    %v255 = vrot.slane %v232, 1
    %v256 = vsel %vm73, %v254, %v255
    %257 = vrot.lane.b32.xlu0 %v256, 80
    %v258 = vpop.permute.xlu0 %257
    %259 = vrot.lane.b32.xlu0 %v255, 80
    %v260 = vpop.permute.xlu0 %259
    %263 = vst.msk [vmem:[#allocation2 + $0x20] sm:$0xff] %vm123, %v258
    %264 = vst.msk [vmem:[#allocation2 + $0x30] sm:$0x7f] %vm125, %v260
    %s265 = scalar_lea.vmem [#allocation3], 96
    %v266 = vld [vmem:[%s265] sm:$0xff]
    %v267 = vld [vmem:[%s265 + $0x8] sm:$0xff]
    %v270 = vrot.slane %v266, 7
    %v271 = vrot.slane %v267, 7
    %v272 = vsel %vm54, %v270, %v271
    %273 = vrot.lane.b32.xlu0 %v270, 96
    %v274 = vpop.permute.xlu0 %273
    %275 = vrot.lane.b32.xlu0 %v272, 96
    %v276 = vpop.permute.xlu0 %275
    %279 = vst.msk [vmem:[#allocation2 + $0x20] sm:$0xfe] %vm141, %v274
    %280 = vst.msk [vmem:[#allocation2 + $0x30] sm:$0xff] %vm143, %v276
    %281 = vrot.lane.b32.xlu0 %v266, 112
    %v282 = vpop.permute.xlu0 %281
    %283 = vrot.lane.b32.xlu0 %v267, 112
    %v284 = vpop.permute.xlu0 %283
    %287 = vst.msk [vmem:[#allocation2 + $0x20] sm:$0xff] %vm151, %v282
    %288 = vst.msk [vmem:[#allocation2 + $0x30] sm:$0xff] %vm151, %v284
    %v289 = vrot.slane %v266, 1
    %v290 = vrot.slane %v267, 1
    %v291 = vsel %vm73, %v289, %v290
    %294 = vst.msk [vmem:[#allocation2 + $0x28] sm:$0xff] %vm62, %v291
    %295 = vst.msk [vmem:[#allocation2 + $0x38] sm:$0x7f] %vm160, %v290
    %s296 = scalar_lea.vmem [#allocation3], 112
    %v297 = vld [vmem:[%s296] sm:$0xff]
    %v298 = vld [vmem:[%s296 + $0x8] sm:$0xff]
    %v301 = vrot.slane %v297, 7
    %v302 = vrot.slane %v298, 7
    %v303 = vsel %vm54, %v301, %v302
    %304 = vrot.lane.b32.xlu0 %v301, 16
    %v305 = vpop.permute.xlu0 %304
    %306 = vrot.lane.b32.xlu0 %v303, 16
    %v307 = vpop.permute.xlu0 %306
    %310 = vst.msk [vmem:[#allocation2 + $0x28] sm:$0xfe] %vm176, %v305
    %311 = vst.msk [vmem:[#allocation2 + $0x38] sm:$0xff] %vm70, %v307
    %312 = vrot.lane.b32.xlu0 %v297, 32
    %v313 = vpop.permute.xlu0 %312
    %314 = vrot.lane.b32.xlu0 %v298, 32
    %v315 = vpop.permute.xlu0 %314
    %318 = vst.msk [vmem:[#allocation2 + $0x28] sm:$0xff] %vm83, %v313
    %319 = vst.msk [vmem:[#allocation2 + $0x38] sm:$0xff] %vm83, %v315
    %v320 = vrot.slane %v297, 1
    %v321 = vrot.slane %v298, 1
    %v322 = vsel %vm73, %v320, %v321
    %323 = vrot.lane.b32.xlu0 %v322, 48
    %v324 = vpop.permute.xlu0 %323
    %325 = vrot.lane.b32.xlu0 %v321, 48
    %v326 = vpop.permute.xlu0 %325
    %329 = vst.msk [vmem:[#allocation2 + $0x28] sm:$0xff] %vm103, %v324
    %330 = vst.msk [vmem:[#allocation2 + $0x38] sm:$0x7f] %vm197, %v326
    %v331 = vld [vmem:[#allocation2] sm:$0xff]
    %v332 = vld [vmem:[#allocation2 + $0x8] sm:$0xff]
    %v333 = vld [vmem:[#allocation2 + $0x10] sm:$0xff]
    %v334 = vld [vmem:[#allocation2 + $0x18] sm:$0xff]
    %v335 = vld [vmem:[#allocation2 + $0x20] sm:$0xff]
    %v336 = vld [vmem:[#allocation2 + $0x28] sm:$0xff]
    %v337 = vld [vmem:[#allocation2 + $0x30] sm:$0xff]
    %v338 = vld [vmem:[#allocation2 + $0x38] sm:$0xff]
    %v339 = vpack.c.bf16 %v333, %v331
    %v340 = vpack.c.bf16 %v334, %v332
    %v341 = vpack.c.bf16 %v337, %v335
    %v342 = vpack.c.bf16 %v338, %v336
    %v343 = vld [vmem:[#allocation6] sm:$0xf]
    %v344 = vld [vmem:[#allocation6 + $0x4] sm:$0xf]
    %v345 = vld [vmem:[#allocation6 + $0x8] sm:$0xf]
    %v346 = vld [vmem:[#allocation6 + $0xc] sm:$0xf]
    %v347 = vld [vmem:[#allocation6 + $0x10] sm:$0xf]
    %v348 = vld [vmem:[#allocation6 + $0x14] sm:$0xf]
    %v349 = vld [vmem:[#allocation6 + $0x18] sm:$0xf]
    %v350 = vld [vmem:[#allocation6 + $0x1c] sm:$0xf]
    %v351 = vld [vmem:[#allocation6 + $0x20] sm:$0xf]
    %v352 = vld [vmem:[#allocation6 + $0x24] sm:$0xf]
    %v353 = vld [vmem:[#allocation6 + $0x28] sm:$0xf]
    %v354 = vld [vmem:[#allocation6 + $0x2c] sm:$0xf]
    %v355 = vld [vmem:[#allocation6 + $0x30] sm:$0xf]
    %v356 = vld [vmem:[#allocation6 + $0x34] sm:$0xf]
    %v357 = vld [vmem:[#allocation6 + $0x38] sm:$0xf]
    %v358 = vld [vmem:[#allocation6 + $0x3c] sm:$0xf]
    %v359 = vld [vmem:[#allocation6 + $0x40] sm:$0xf]
    %v360 = vld [vmem:[#allocation6 + $0x44] sm:$0xf]
    %v361 = vld [vmem:[#allocation6 + $0x48] sm:$0xf]
    %v362 = vld [vmem:[#allocation6 + $0x4c] sm:$0xf]
    %v363 = vld [vmem:[#allocation6 + $0x50] sm:$0xf]
    %v364 = vld [vmem:[#allocation6 + $0x54] sm:$0xf]
    %v365 = vld [vmem:[#allocation6 + $0x58] sm:$0xf]
    %v366 = vld [vmem:[#allocation6 + $0x5c] sm:$0xf]
    %v391 = vunpack.c.l.b16 %v343
    %v392 = vunpack.c.l.b16 %v344
    %v393 = vunpack.c.l.b16 %v345
    %v394 = vunpack.c.l.b16 %v346
    %v395 = vunpack.c.l.b16 %v347
    %v396 = vunpack.c.l.b16 %v348
    %v397 = vunpack.c.l.b16 %v349
    %v398 = vunpack.c.l.b16 %v350
    %v399 = vunpack.c.l.b16 %v351
    %v400 = vunpack.c.l.b16 %v352
    %v401 = vunpack.c.l.b16 %v353
    %v402 = vunpack.c.l.b16 %v354
    %v403 = vunpack.c.l.b16 %v355
    %v404 = vunpack.c.l.b16 %v356
    %v405 = vunpack.c.l.b16 %v357
    %v406 = vunpack.c.l.b16 %v358
    %v407 = vunpack.c.l.b16 %v359
    %v408 = vunpack.c.l.b16 %v360
    %v409 = vunpack.c.l.b16 %v361
    %v410 = vunpack.c.l.b16 %v362
    %v411 = vunpack.c.l.b16 %v363
    %v412 = vunpack.c.l.b16 %v364
    %v413 = vunpack.c.l.b16 %v365
    %v414 = vunpack.c.l.b16 %v366
    %v415 = vpack.c.b16 %v392, %v391
    %v416 = vpack.c.b16 %v394, %v393
    %v417 = vpack.c.b16 %v396, %v395
    %v418 = vpack.c.b16 %v398, %v397
    %v419 = vpack.c.b16 %v400, %v399
    %v420 = vpack.c.b16 %v402, %v401
    %v421 = vpack.c.b16 %v404, %v403
    %v422 = vpack.c.b16 %v406, %v405
    %v423 = vpack.c.b16 %v408, %v407
    %v424 = vpack.c.b16 %v410, %v409
    %v425 = vpack.c.b16 %v412, %v411
    %v426 = vpack.c.b16 %v414, %v413
    %v440 = vsel %vm42, %v340, 0
    %v443 = vsel %vm42, %v342, 0
    %445 = vmatprep.subr.bf16.mxu0 0
    %446 = vmatpush1.bf16.msra.mxu0 %v415
    %447 = vmatprep.subr.bf16.mxu0 0
    %448 = vmatpush1.bf16.msra.mxu0 %v416
    %449 = vmatprep.subr.bf16.mxu0 0
    %450 = vmatpush1.bf16.msra.mxu0 %v417
    %451 = vmatprep.subr.bf16.mxu0 0
    %452 = vmatpush1.bf16.msra.mxu0 %v418
    %453 = vmatprep.subr.bf16.mxu0 0
    %454 = vmatpush1.bf16.msra.mxu0 %v419
    %455 = vmatprep.subr.bf16.mxu0 0
    %456 = vmatpush1.bf16.msra.mxu0 %v420
    %457 = vmatprep.subr.bf16.mxu0 0
    %458 = vmatpush1.bf16.msra.mxu0 %v421
    %459 = vmatprep.subr.bf16.mxu0 0
    %460 = vmatpush1.bf16.msra.mxu0 %v422
    %461 = vmatprep.subr.bf16.mxu0 0
    %462 = vmatpush1.bf16.msra.mxu0 %v423
    %463 = vmatprep.subr.bf16.mxu0 0
    %464 = vmatpush1.bf16.msra.mxu0 %v424
    %465 = vmatprep.subr.bf16.mxu0 0
    %466 = vmatpush1.bf16.msra.mxu0 %v425
    %467 = vmatprep.subr.bf16.mxu0 0
    %468 = vmatpush1.bf16.msra.mxu0 %v426
    %469 = vmatprep.subr.bf16.mxu0 0
    %470 = vmatpush1.bf16.msra.mxu0 0
    %471 = vmatprep.subr.bf16.mxu0 0
    %472 = vmatpush1.bf16.msra.mxu0 0
    %473 = vmatprep.subr.bf16.mxu0 0
    %474 = vmatpush1.bf16.msra.mxu0 0
    %475 = vmatprep.subr.bf16.mxu0 0
    %476 = vmatpush1.bf16.msra.mxu0 0
    %477 = vmatprep.mubr.bf16.mxu0 %v440
    %478 = vmatmul.mubr.bf16.gmra.mrb[0].mxu0 %v339
    %v479 = vpop.f32.mrb[0].mxu0
    %v480 = vadd.f32 0.0, %v479
    %v481 = vpop.f32.mrb[0].mxu0
    %v482 = vpop.f32.mrb[0].mxu0
    %v483 = vadd.f32 0.0, %v482
    %v484 = vpop.f32.mrb[0].mxu0
    %485 = vmatprep.mubr.bf16.mxu0 %v443
    %486 = vmatmul.mubr.bf16.gmra.mrb[0].mxu0 %v341
    %v487 = vpop.f32.mrb[0].mxu0
    %v488 = vadd.f32 0.0, %v487
    %v489 = vpop.f32.mrb[0].mxu0
    %v490 = vpop.f32.mrb[0].mxu0
    %v491 = vadd.f32 0.0, %v490
    %v492 = vpop.f32.mrb[0].mxu0
    %493 = vdwg.mxu0
    %v494 = vmax.f32 %v480, 0.0
    %v495 = vmax.f32 %v483, 0.0
    %v496 = vmax.f32 %v488, 0.0
    %v497 = vmax.f32 %v491, 0.0
    %498 = vst.msk [vmem:[#allocation8] sm:$0xff] %vm62, %v494
    %499 = vst.msk [vmem:[#allocation8 + $0x8] sm:$0xff] %vm62, %v495
    %502 = vrot.lane.b32.xlu0 %v494, 112
    %v503 = vpop.permute.xlu0 %502
    %504 = vrot.lane.b32.xlu0 %v495, 112
    %v505 = vpop.permute.xlu0 %504
    %s508 = scalar_lea.vmem [#allocation8], 16
    %509 = vst.msk [vmem:[%s508] sm:$0xff] %vm62, %v503
    %510 = vst.msk [vmem:[%s508 + $0x8] sm:$0xff] %vm62, %v505
    %511 = vrot.lane.b32.xlu0 %v494, 96
    %v512 = vpop.permute.xlu0 %511
    %513 = vrot.lane.b32.xlu0 %v495, 96
    %v514 = vpop.permute.xlu0 %513
    %s517 = scalar_lea.vmem [#allocation8], 32
    %518 = vst.msk [vmem:[%s517] sm:$0xff] %vm62, %v512
    %519 = vst.msk [vmem:[%s517 + $0x8] sm:$0xff] %vm62, %v514
    %520 = vrot.lane.b32.xlu0 %v494, 80
    %v521 = vpop.permute.xlu0 %520
    %522 = vrot.lane.b32.xlu0 %v495, 80
    %v523 = vpop.permute.xlu0 %522
    %s526 = scalar_lea.vmem [#allocation8], 48
    %527 = vst.msk [vmem:[%s526] sm:$0xff] %vm62, %v521
    %528 = vst.msk [vmem:[%s526 + $0x8] sm:$0xff] %vm62, %v523
    %529 = vrot.lane.b32.xlu0 %v494, 64
    %v530 = vpop.permute.xlu0 %529
    %531 = vrot.lane.b32.xlu0 %v495, 64
    %v532 = vpop.permute.xlu0 %531
    %s535 = scalar_lea.vmem [#allocation8], 64
    %536 = vst.msk [vmem:[%s535] sm:$0xff] %vm62, %v530
    %537 = vst.msk [vmem:[%s535 + $0x8] sm:$0xff] %vm62, %v532
    %538 = vrot.lane.b32.xlu0 %v494, 48
    %v539 = vpop.permute.xlu0 %538
    %540 = vrot.lane.b32.xlu0 %v495, 48
    %v541 = vpop.permute.xlu0 %540
    %s544 = scalar_lea.vmem [#allocation8], 80
    %545 = vst.msk [vmem:[%s544] sm:$0xff] %vm62, %v539
    %546 = vst.msk [vmem:[%s544 + $0x8] sm:$0xff] %vm62, %v541
    %547 = vrot.lane.b32.xlu0 %v494, 32
    %v548 = vpop.permute.xlu0 %547
    %549 = vrot.lane.b32.xlu0 %v495, 32
    %v550 = vpop.permute.xlu0 %549
    %s553 = scalar_lea.vmem [#allocation8], 96
    %554 = vst.msk [vmem:[%s553] sm:$0xff] %vm62, %v548
    %555 = vst.msk [vmem:[%s553 + $0x8] sm:$0xff] %vm62, %v550
    %556 = vrot.lane.b32.xlu0 %v494, 16
    %v557 = vpop.permute.xlu0 %556
    %558 = vrot.lane.b32.xlu0 %v495, 16
    %v559 = vpop.permute.xlu0 %558
    %s562 = scalar_lea.vmem [#allocation8], 112
    %563 = vst.msk [vmem:[%s562] sm:$0xff] %vm62, %v557
    %564 = vst.msk [vmem:[%s562 + $0x8] sm:$0xff] %vm62, %v559
    %s565 = scalar_lea.vmem [#allocation8], 128
    %566 = vst.msk [vmem:[%s565] sm:$0xff] %vm62, %v496
    %567 = vst.msk [vmem:[%s565 + $0x8] sm:$0xff] %vm62, %v497
    %570 = vrot.lane.b32.xlu0 %v496, 112
    %v571 = vpop.permute.xlu0 %570
    %572 = vrot.lane.b32.xlu0 %v497, 112
    %v573 = vpop.permute.xlu0 %572
    %s576 = scalar_lea.vmem [#allocation8], 144
    %577 = vst.msk [vmem:[%s576] sm:$0xff] %vm62, %v571
    %578 = vst.msk [vmem:[%s576 + $0x8] sm:$0xff] %vm62, %v573
    %579 = vrot.lane.b32.xlu0 %v496, 96
    %v580 = vpop.permute.xlu0 %579
    %581 = vrot.lane.b32.xlu0 %v497, 96
    %v582 = vpop.permute.xlu0 %581
    %s585 = scalar_lea.vmem [#allocation8], 160
    %586 = vst.msk [vmem:[%s585] sm:$0xff] %vm62, %v580
    %587 = vst.msk [vmem:[%s585 + $0x8] sm:$0xff] %vm62, %v582
    %588 = vrot.lane.b32.xlu0 %v496, 80
    %v589 = vpop.permute.xlu0 %588
    %590 = vrot.lane.b32.xlu0 %v497, 80
    %v591 = vpop.permute.xlu0 %590
    %s594 = scalar_lea.vmem [#allocation8], 176
    %595 = vst.msk [vmem:[%s594] sm:$0xff] %vm62, %v589
    %596 = vst.msk [vmem:[%s594 + $0x8] sm:$0xff] %vm62, %v591
    %597 = vrot.lane.b32.xlu0 %v496, 64
    %v598 = vpop.permute.xlu0 %597
    %599 = vrot.lane.b32.xlu0 %v497, 64
    %v600 = vpop.permute.xlu0 %599
    %s603 = scalar_lea.vmem [#allocation8], 192
    %604 = vst.msk [vmem:[%s603] sm:$0xff] %vm62, %v598
    %605 = vst.msk [vmem:[%s603 + $0x8] sm:$0xff] %vm62, %v600
    %606 = vrot.lane.b32.xlu0 %v496, 48
    %v607 = vpop.permute.xlu0 %606
    %608 = vrot.lane.b32.xlu0 %v497, 48
    %v609 = vpop.permute.xlu0 %608
    %s612 = scalar_lea.vmem [#allocation8], 208
    %613 = vst.msk [vmem:[%s612] sm:$0xff] %vm62, %v607
    %614 = vst.msk [vmem:[%s612 + $0x8] sm:$0xff] %vm62, %v609
    %615 = vrot.lane.b32.xlu0 %v496, 32
    %v616 = vpop.permute.xlu0 %615
    %617 = vrot.lane.b32.xlu0 %v497, 32
    %v618 = vpop.permute.xlu0 %617
    %s621 = scalar_lea.vmem [#allocation8], 224
    %622 = vst.msk [vmem:[%s621] sm:$0xff] %vm62, %v616
    %623 = vst.msk [vmem:[%s621 + $0x8] sm:$0xff] %vm62, %v618
    %624 = vrot.lane.b32.xlu0 %v496, 16
    %v625 = vpop.permute.xlu0 %624
    %626 = vrot.lane.b32.xlu0 %v497, 16
    %v627 = vpop.permute.xlu0 %626
    %s630 = scalar_lea.vmem [#allocation8], 240
    %631 = vst.msk [vmem:[%s630] sm:$0xff] %vm62, %v625
    %632 = vst.msk [vmem:[%s630 + $0x8] sm:$0xff] %vm62, %v627
    // Predicated region
    $region18: #{_forward.1} parent=1 // pred_check
      _
    $region19: #{_forward.1} parent=1 // pred_check_branch
      %634 = sbr.rel (0) target = $region21
    $region20: #{_forward.1} parent=1 // pred_region
      %s636 = ssub.s32 4096, 4096
      %637 = vsyncadd [#allocation5], %s636
      %s638 = sshll.u32 [#allocation8], 4
      %s639 = int_to_ptr.vmem [resolvable:$true] %s638
      %644 = dma.vmem_to_hbm [thread:$0]  %s639, 4096, %s2, [#allocation5], 128, 128, 8
    $region21: #{_forward.1} parent=1 // pred_fallthru
      _
    // Predicated region
    $region22: #{_forward.1} parent=1 // pred_check
      _
    $region23: #{_forward.1} parent=1 // pred_check_branch
      %646 = sbr.rel (0) target = $region25
    $region24: #{_forward.1} parent=1 // pred_region
      %647 = dma.done [#allocation5], 4096
    $region25: #{_forward.1} parent=1 // pred_fallthru
      _
    %648 = vsyncpa [#allocation4], 1
    %649 = vsyncpa [#allocation7], 1
    %650 = vsyncpa [#allocation5], 1

</llo_original>
